<compile_context>
chip_gen: v5e
topology: v5e:2x2
jax: 0.10.0
libtpu: 0.0.40
codegen_flags: <defaults>
</compile_context>

<pallas_src>
import functools

import jax
import jax.numpy as jnp
import numpy as np
from jax.experimental import pallas as pl
from jax.experimental.pallas import tpu as pltpu


def _round_up(v, m):
    return ((v + m - 1) // m) * m


# ----------------------------- Pallas kernel ------------------------------ #
def _complex_tconv_kernel(w_ref, x_ref, o_ref):
    # w_ref: (2*Cout*k*k, 2*Cin) bf16 -- fused real+imag weight, resident in VMEM
    # x_ref: (2*Cin, tm)         bf16 -- lane-dense tile of flattened input pixels
    # o_ref: (2*Cout*k*k, tm)    f32  -- lane-dense output tile (single MXU launch)
    o_ref[...] = jnp.dot(w_ref[...], x_ref[...],
                         preferred_element_type=jnp.float32)


# ------------------------------- wrapper ----------------------------------- #
@functools.partial(jax.jit, static_argnames=("tm",))
def complex_trans_conv(x, w_re, w_im, *, tm=1024):
    """x: (B, 2, Cin, H, W); w_*: (Cin, Cout, 2, 2).  Returns (B, 2, Cout, 2H, 2W).

    Equivalent to the PyTorch forward with act=None (BatchNorm branch skipped).
    """
    # TODO(synk): BatchNorm2d branch (only taken when act is truthy) not implemented.
    B, _, Cin, H, W = x.shape
    Cout = w_re.shape[1]
    Kk = w_re.shape[2]                      # kernel_size == stride == 2
    N = Cout * Kk * Kk
    M = B * H * W

    # ---- fold complex arithmetic + real/imag fusion into ONE weight matrix ----
    Wre = w_re.reshape(Cin, N)
    Wim = w_im.reshape(Cin, N)
    W_real = jnp.concatenate([Wre, -Wim], axis=0)          # (2*Cin, N)
    W_imag = jnp.concatenate([Wim, Wre], axis=0)           # (2*Cin, N)
    W_fused_T = jnp.concatenate([W_real, W_imag], axis=1).T.astype(jnp.bfloat16)
    # W_fused_T: (2*N, 2*Cin)

    # ---- single transpose to a lane-dense (2*Cin, M) input layout ----
    X_T = jnp.transpose(x.astype(jnp.bfloat16), (1, 2, 0, 3, 4)).reshape(2 * Cin, M)

    # Big tiles (per-step overhead amortization) but keep >=2 grid steps when
    # possible so v7x's two TensorCores are both used by the 'parallel' axis.
    tm_eff = min(tm, max(128, _round_up(-(-M // 2), 128)))
    Mpad = _round_up(M, tm_eff)
    if Mpad != M:
        X_T = jnp.pad(X_T, ((0, 0), (0, Mpad - M)))

    out_t = pl.pallas_call(
        _complex_tconv_kernel,
        out_shape=jax.ShapeDtypeStruct((2 * N, Mpad), jnp.float32),
        grid=(Mpad // tm_eff,),
        in_specs=[
            pl.BlockSpec((2 * N, 2 * Cin), lambda i: (0, 0)),   # tiny weight, loaded once
            pl.BlockSpec((2 * Cin, tm_eff), lambda i: (0, i)),  # streaming input tile
        ],
        out_specs=pl.BlockSpec((2 * N, tm_eff), lambda i: (0, i)),
        compiler_params=pltpu.CompilerParams(dimension_semantics=("parallel",)),
    )(W_fused_T, X_T)

    # ---- scatter the k*k taps to the upsampled spatial grid (one transpose) ----
    o = out_t[:, :M].reshape(2, Cout, Kk, Kk, B, H, W)
    o = jnp.transpose(o, (4, 0, 1, 5, 2, 6, 3))            # (B, 2, Cout, H, ki, W, kj)
    return o.reshape(B, 2, Cout, H * Kk, W * Kk)


# ---------------------------- numpy reference ------------------------------ #
def _ref_tconv(x, w):  # x: (B, Cin, H, W), w: (Cin, Cout, 2, 2), stride=2, pad=0
    B, Cin, H, W = x.shape
    Cout = w.shape[1]
    out = np.zeros((B, Cout, 2 * H, 2 * W), np.float32)
    for ki in range(2):
        for kj in range(2):
            out[:, :, ki::2, kj::2] = np.einsum("bchw,cd->bdhw", x, w[:, :, ki, kj])
    return out


if __name__ == "__main__":
    B, Cin, Cout, H, W = 2, 4, 8, 16, 16
    key = jax.random.PRNGKey(0)
    kx, kr, ki = jax.random.split(key, 3)

    x = jax.random.normal(kx, (B, 2, Cin, H, W), dtype=jnp.float32)

    # Deterministic init mimicking PyTorch ConvTranspose2d default (uniform +-1/sqrt(fan))
    bound = 1.0 / np.sqrt(Cin * 2 * 2)
    w_re = jax.random.uniform(kr, (Cin, Cout, 2, 2), jnp.float32, -bound, bound)
    w_im = jax.random.uniform(ki, (Cin, Cout, 2, 2), jnp.float32, -bound, bound)

    out = complex_trans_conv(x, w_re, w_im)
    out = jax.block_until_ready(out)
    assert out.shape == (B, 2, Cout, 2 * H, 2 * W), out.shape

    # Independent reference, computed from the same bf16-rounded operands the
    # kernel consumes (products are exact in f32, accumulation in f32).
    xn = np.asarray(x.astype(jnp.bfloat16).astype(jnp.float32))
    wrn = np.asarray(w_re.astype(jnp.bfloat16).astype(jnp.float32))
    win = np.asarray(w_im.astype(jnp.bfloat16).astype(jnp.float32))
    real_ref = _ref_tconv(xn[:, 0], wrn) - _ref_tconv(xn[:, 1], win)
    imag_ref = _ref_tconv(xn[:, 1], wrn) + _ref_tconv(xn[:, 0], win)
    ref = np.stack([real_ref, imag_ref], axis=1)
    np.testing.assert_allclose(np.asarray(out), ref, rtol=1e-3, atol=1e-4)

    print("KERNEL_OK")
</pallas_src>

<mosaic_0001>
module attributes {stable_mosaic.version = 11 : i64} {
  func.func @_complex_tconv_kernel(%arg0: i32, %arg1: memref<64x8xbf16, #tpu.memory_space<vmem>>, %arg2: memref<8x256xbf16, #tpu.memory_space<vmem>>, %arg3: memref<64x256xf32, #tpu.memory_space<vmem>>) attributes {dimension_semantics = [#tpu.dimension_semantics<parallel>], iteration_bounds = array<i64: 2>, scalar_prefetch = 0 : i64, scratch_operands = 0 : i64, tpu.core_type = #tpu.core_type<tc>, window_params = [{pipeline_mode = #tpu.pipeline_mode<synchronous>, transform_indices = @transform_0, window_bounds = array<i64: 64, 8>}, {transform_indices = @transform_1, window_bounds = array<i64: 8, 256>}, {transform_indices = @transform_2, window_bounds = array<i64: 64, 256>}]} {
    %c0 = arith.constant 0 : index
    %c0_0 = arith.constant 0 : index
    %0 = vector.load %arg1[%c0, %c0_0] : memref<64x8xbf16, #tpu.memory_space<vmem>>, vector<64x8xbf16>
    %c0_1 = arith.constant 0 : index
    %c0_2 = arith.constant 0 : index
    %1 = vector.load %arg2[%c0_1, %c0_2] : memref<8x256xbf16, #tpu.memory_space<vmem>>, vector<8x256xbf16>
    %cst = arith.constant dense<0.000000e+00> : vector<64x256xf32>
    %2 = tpu.matmul %0, %1, %cst {dimension_numbers = #tpu.dot_dimension_numbers<[1], [0], [0], [1], [0, 0, 1, 1], [], []>} : vector<64x8xbf16>, vector<8x256xbf16>, vector<64x256xf32> -> vector<64x256xf32>
    %c0_3 = arith.constant 0 : index
    %c0_4 = arith.constant 0 : index
    %3 = vector.load %arg3[%c0_3, %c0_4] : memref<64x256xf32, #tpu.memory_space<vmem>>, vector<64x256xf32>
    tpu.vector_store %arg3[%c0_3, %c0_4], %2 {strides = array<i32>} : memref<64x256xf32, #tpu.memory_space<vmem>>, vector<64x256xf32>,
    return
  }
  func.func @transform_0(%arg0: i32) -> (i32, i32) {
    %c0_i32 = arith.constant 0 : i32
    %c0_i32_0 = arith.constant 0 : i32
    %c0_i32_1 = arith.constant 0 : i32
    return %c0_i32, %c0_i32_0 : i32, i32
  }
  func.func @transform_1(%arg0: i32) -> (i32, i32) {
    %c0_i32 = arith.constant 0 : i32
    %c0_i32_0 = arith.constant 0 : i32
    return %c0_i32, %arg0 : i32, i32
  }
  func.func @transform_2(%arg0: i32) -> (i32, i32) {
    %c0_i32 = arith.constant 0 : i32
    %c0_i32_0 = arith.constant 0 : i32
    return %c0_i32, %arg0 : i32, i32
  }
}

</mosaic_0001>

<llo_original>
// kernel: complex_trans_conv.1
$region0: #{complex_trans_conv.1}
  #allocation0 [shape = 'u32[]', space=smem, size = 0x4, offset = 0x4, fixed_abs, tag = 'smem constant byte address 0x4 - core index']
  #allocation1 [shape = 'u32[72,128]{1,0:T(1,128)}', space=vmem, size = 0x9000, scoped, tag = 'internal scratch']
  %s0 = inlined_call_operand.vmem [shape: bf16[64,8], index: 0, kind: input, shape index: {}]
  %s1 = inlined_call_operand.vmem [shape: bf16[8,512], index: 1, kind: input, shape index: {}]
  %s2 = inlined_call_operand.vmem [shape: f32[64,512], index: 2, kind: output, shape index: {}]
  %s3 = sld [smem:[#allocation0]]
  $region60: #{complex_trans_conv.1} parent=0
    _
  %s5 = ssub.s32 1, %s3
  %s6 = scalar_select 0, %s5, %s3
  $region1: #{complex_trans_conv.1} parent=0
    #allocation2 [shape = 'u8[131072]{0}', space=vmem, size = 0x20000, scoped, tag = 'output window, operand 0']
    loop: start=0, step=1, limit=4
    $region2: #{complex_trans_conv.1} parent=1 // loop_pre_header
      _
    $region3: #{complex_trans_conv.1} parent=1 // loop_header
      %s8 = sphi 0, %s12
      %p9 = scmp.ge.s32.totalorder %s8, 4
      %s16 = sphi 0, %s16
      %s18 = sphi 0, %s16
      %s19 = sphi 0, %s18
      %s33 = sphi 0, %s19
      %s39 = sphi 0, %s41
      %s42 = sphi 0, %s39
      %s43 = sphi 0, %s42
      %s59 = sphi 0, %s43
      %s65 = sphi 0, %s67
      %s68 = sphi 0, %s65
      %s69 = sphi 0, %s68
      %s85 = sphi 0, %s69
    $region4: #{complex_trans_conv.1} parent=1 // loop_header_branch
      %11 = sbr.rel (%p9) target = $region8
    $region5: #{complex_trans_conv.1} parent=1 // loop_body
      %s13 = ssub.s32 %s8, 1
      %s14 = ssub.s32 %s8, 2
      %s15 = sadd.s32 %s8, 1
      %s17 = sadd.s32 %s16, 1
      %p20 = scmp.eq.s32.totalorder %s8, 1
      %p21 = scmp.ne.s32.totalorder %s16, %s18
      %p22 = scmp.eq.s32.totalorder %s8, 0
      %p23 = por %p21, %p22
      %p24 = scmp.ne.s32.totalorder %s16, %s18
      %p25 = scmp.eq.s32.totalorder %s13, 1
      %p26 = por %p24, %p25
      %p27 = scmp.ne.s32.totalorder %s18, %s19
      %p28 = scmp.eq.s32.totalorder %s13, 0
      %p29 = por %p27, %p28
      %p30 = scmp.ne.s32.totalorder %s18, %s19
      %p31 = scmp.eq.s32.totalorder %s14, 1
      %p32 = por %p30, %p31
      %p34 = scmp.ne.s32.totalorder %s19, %s33
      %p35 = scmp.eq.s32.totalorder %s14, 0
      %p36 = por %p34, %p35
      %s37 = ssub.s32 %s8, %s15
      %p38 = scmp.eq.s32.totalorder %s37, 0
      %s40 = sadd.s32 %s39, 1
      %s41 = scalar_select %p38, %s39, %s40
      %p44 = pneg %p38
      %p45 = scmp.eq.s32.totalorder %s8, 1
      %p46 = por %p44, %p45
      %p47 = scmp.ne.s32.totalorder %s39, %s42
      %p48 = scmp.eq.s32.totalorder %s8, 0
      %p49 = por %p47, %p48
      %p50 = scmp.ne.s32.totalorder %s39, %s42
      %p51 = scmp.eq.s32.totalorder %s13, 1
      %p52 = por %p50, %p51
      %p53 = scmp.ne.s32.totalorder %s42, %s43
      %p54 = scmp.eq.s32.totalorder %s13, 0
      %p55 = por %p53, %p54
      %p56 = scmp.ne.s32.totalorder %s42, %s43
      %p57 = scmp.eq.s32.totalorder %s14, 1
      %p58 = por %p56, %p57
      %p60 = scmp.ne.s32.totalorder %s43, %s59
      %p61 = scmp.eq.s32.totalorder %s14, 0
      %p62 = por %p60, %p61
      %s63 = ssub.s32 %s8, %s15
      %p64 = scmp.eq.s32.totalorder %s63, 0
      %s66 = sadd.s32 %s65, 1
      %s67 = scalar_select %p64, %s65, %s66
      %p70 = pneg %p64
      %p71 = scmp.eq.s32.totalorder %s8, 1
      %p72 = por %p70, %p71
      %p73 = scmp.ne.s32.totalorder %s65, %s68
      %p74 = scmp.eq.s32.totalorder %s8, 0
      %p75 = por %p73, %p74
      %p76 = scmp.ne.s32.totalorder %s65, %s68
      %p77 = scmp.eq.s32.totalorder %s13, 1
      %p78 = por %p76, %p77
      %p79 = scmp.ne.s32.totalorder %s68, %s69
      %p80 = scmp.eq.s32.totalorder %s13, 0
      %p81 = por %p79, %p80
      %p82 = scmp.ne.s32.totalorder %s68, %s69
      %p83 = scmp.eq.s32.totalorder %s14, 1
      %p84 = por %p82, %p83
      %p86 = scmp.ne.s32.totalorder %s69, %s85
      %p87 = scmp.eq.s32.totalorder %s14, 0
      %p88 = por %p86, %p87
      %p89 = scmp.le.s32.totalorder 1, %s8
      %p90 = scmp.lt.s32.totalorder %s8, 3
      %p91 = pnand %p89, %p90
      %p92 = pneg %p91
      // Predicated region
      $region9: #{complex_trans_conv.1} parent=5 // pred_check
        _
      $region10: #{complex_trans_conv.1} parent=5 // pred_check_branch
        %94 = sbr.rel (%p91) target = $region12
      $region11: #{complex_trans_conv.1} parent=5 // pred_region
        %s95 = ssub.s32 %s8, 1
        // Predicated region
        $region13: #{complex_trans_conv.1} parent=11 // pred_check
          %p96 = pneg %p29
        $region14: #{complex_trans_conv.1} parent=11 // pred_check_branch
          %98 = sbr.rel (%p96) target = $region16
        $region15: #{complex_trans_conv.1} parent=11 // pred_region
          _
        $region16: #{complex_trans_conv.1} parent=11 // pred_fallthru
          _
      $region12: #{complex_trans_conv.1} parent=5 // pred_fallthru
        _
      %p99 = scmp.lt.s32.totalorder %s8, 2
      // Predicated region
      $region17: #{complex_trans_conv.1} parent=5 // pred_check
        %p100 = pneg %p99
      $region18: #{complex_trans_conv.1} parent=5 // pred_check_branch
        %102 = sbr.rel (%p100) target = $region20
      $region19: #{complex_trans_conv.1} parent=5 // pred_region
        // Predicated region
        $region21: #{complex_trans_conv.1} parent=19 // pred_check
          %p103 = pneg %p49
        $region22: #{complex_trans_conv.1} parent=19 // pred_check_branch
          %105 = sbr.rel (%p103) target = $region24
        $region23: #{complex_trans_conv.1} parent=19 // pred_region
          %s106 = smul.u32 2, %s8
          %p107 = scmp.lt.s32.totalorder %s106, 3
          %s108 = scalar_select %p107, %s106, 3
          %s109 = smul.addr %s108, 4
          %s110 = scalar_lea.vmem %s1, %s109
          %s111 = smul.u32 2, %s8
        $region24: #{complex_trans_conv.1} parent=19 // pred_fallthru
          _
      $region20: #{complex_trans_conv.1} parent=5 // pred_fallthru
        _
      %p112 = scmp.le.s32.totalorder 1, %s8
      %p113 = scmp.lt.s32.totalorder %s8, 3
      %p114 = pnand %p112, %p113
      %p115 = pneg %p114
      // Predicated region
      $region25: #{complex_trans_conv.1} parent=5 // pred_check
        _
      $region26: #{complex_trans_conv.1} parent=5 // pred_check_branch
        %117 = sbr.rel (%p114) target = $region28
      $region27: #{complex_trans_conv.1} parent=5 // pred_region
        %s118 = ssub.s32 %s8, 1
        %p119 = pneg %p29
        %p120 = pneg %p26
        %s121 = smul.u32 2, %s13
        %p122 = scmp.lt.s32.totalorder %s121, 3
        %s123 = scalar_select %p122, %s121, 3
        %s124 = smul.addr %s123, 4
        %s125 = scalar_lea.vmem %s1, %s124
        %p126 = pneg %p55
        %p127 = pneg %p52
        %p128 = pneg %p81
        %p129 = pneg %p78
        %s130 = sand.u32 %s68, 1
        %s131 = sand.u32 %s68, 1
        %s132 = smul.addr %s131, 128
        %s133 = scalar_lea.vmem [#allocation2], %s132
        %s134 = smul.u32 2, %s13
        %p135 = scmp.lt.s32.totalorder %s134, 3
        %s136 = scalar_select %p135, %s134, 3
        %s137 = smul.addr %s136, 4
        %s138 = scalar_lea.vmem %s1, %s137
        %s139 = smul.u32 2, %s13
        %s140 = smul.u32 2, %s13
        %v142 = vld [vmem:[%s0] sm:$0xf]
        %v143 = vld [vmem:[%s0 + $0x4] sm:$0xf]
        %v144 = vld [vmem:[%s0 + $0x8] sm:$0xf]
        %v145 = vld [vmem:[%s0 + $0xc] sm:$0xf]
        %v146 = vld [vmem:[%s0 + $0x10] sm:$0xf]
        %v147 = vld [vmem:[%s0 + $0x14] sm:$0xf]
        %v148 = vld [vmem:[%s0 + $0x18] sm:$0xf]
        %v149 = vld [vmem:[%s0 + $0x1c] sm:$0xf]
        %v150 = vld [vmem:[%s138] sm:$0xff]
        %v159 = vunpack.c.l.b16 %v142
        %v160 = vunpack.c.l.b16 %v143
        %v161 = vunpack.c.l.b16 %v144
        %v162 = vunpack.c.l.b16 %v145
        %v163 = vunpack.c.l.b16 %v146
        %v164 = vunpack.c.l.b16 %v147
        %v165 = vunpack.c.l.b16 %v148
        %v166 = vunpack.c.l.b16 %v149
        %v167 = vpack.c.b16 %v160, %v159
        %v168 = vpack.c.b16 %v162, %v161
        %v169 = vpack.c.b16 %v164, %v163
        %v170 = vpack.c.b16 %v166, %v165
        %v172 = vunpack.c.l.b16 %v150
        %v173 = vunpack.c.h.b16 %v150
        %v174 = vpack.c.b16 %v172, %v172
        %v175 = vpack.c.b16 %v173, %v173
        %vm176 = vcmask 64512
        %v178 = vsel %vm176, %v167, 0
        %v181 = vsel %vm176, %v168, 0
        %v184 = vsel %vm176, %v169, 0
        %v187 = vsel %vm176, %v170, 0
        %vm189 = vcmask 1043456
        %v191 = vsel %vm189, %v174, 0
        %v194 = vsel %vm189, %v175, 0
        %196 = vmatpush.bf16.msra.mxu0 0
        %197 = vmatpush.bf16.msra.mxu0 0
        %198 = vmatpush.bf16.msra.mxu0 0
        %199 = vmatpush.bf16.msra.mxu0 0
        %200 = vmatpush.bf16.msra.mxu0 0
        %201 = vmatpush.bf16.msra.mxu0 0
        %202 = vmatpush.bf16.msra.mxu0 0
        %203 = vmatpush.bf16.msra.mxu0 %v191
        %204 = vmatmul.bf16.gmra.mxu0 %v178
        %v205 = vpop.f32.mrf.mxu0
        %v206 = vadd.f32 0.0, %v205
        %v207 = vpop.f32.mrf.mxu0
        %v208 = vadd.f32 0.0, %v207
        %209 = vmatmul.bf16.gmra.mxu0 %v181
        %v210 = vpop.f32.mrf.mxu0
        %v211 = vadd.f32 0.0, %v210
        %v212 = vpop.f32.mrf.mxu0
        %v213 = vadd.f32 0.0, %v212
        %214 = vmatmul.bf16.gmra.mxu0 %v184
        %v215 = vpop.f32.mrf.mxu0
        %v216 = vadd.f32 0.0, %v215
        %v217 = vpop.f32.mrf.mxu0
        %v218 = vadd.f32 0.0, %v217
        %219 = vmatmul.bf16.gmra.mxu0 %v187
        %v220 = vpop.f32.mrf.mxu0
        %v221 = vadd.f32 0.0, %v220
        %v222 = vpop.f32.mrf.mxu0
        %v223 = vadd.f32 0.0, %v222
        %224 = vdwg.mxu0
        %225 = vmatpush.bf16.msra.mxu0 0
        %226 = vmatpush.bf16.msra.mxu0 0
        %227 = vmatpush.bf16.msra.mxu0 0
        %228 = vmatpush.bf16.msra.mxu0 0
        %229 = vmatpush.bf16.msra.mxu0 0
        %230 = vmatpush.bf16.msra.mxu0 0
        %231 = vmatpush.bf16.msra.mxu0 0
        %232 = vmatpush.bf16.msra.mxu0 %v194
        %233 = vmatmul.bf16.gmra.mxu0 %v178
        %v234 = vpop.f32.mrf.mxu0
        %v235 = vadd.f32 0.0, %v234
        %v236 = vpop.f32.mrf.mxu0
        %v237 = vadd.f32 0.0, %v236
        %238 = vmatmul.bf16.gmra.mxu0 %v181
        %v239 = vpop.f32.mrf.mxu0
        %v240 = vadd.f32 0.0, %v239
        %v241 = vpop.f32.mrf.mxu0
        %v242 = vadd.f32 0.0, %v241
        %243 = vmatmul.bf16.gmra.mxu0 %v184
        %v244 = vpop.f32.mrf.mxu0
        %v245 = vadd.f32 0.0, %v244
        %v246 = vpop.f32.mrf.mxu0
        %v247 = vadd.f32 0.0, %v246
        %248 = vmatmul.bf16.gmra.mxu0 %v187
        %v249 = vpop.f32.mrf.mxu0
        %v250 = vadd.f32 0.0, %v249
        %v251 = vpop.f32.mrf.mxu0
        %v252 = vadd.f32 0.0, %v251
        %253 = vdwg.mxu0
        %254 = vst [vmem:[%s133] sm:$0xff] %v206
        %255 = vst [vmem:[%s133 + $0x8] sm:$0xff] %v235
        %256 = vst [vmem:[%s133 + $0x10] sm:$0xff] %v208
        %257 = vst [vmem:[%s133 + $0x18] sm:$0xff] %v237
        %258 = vst [vmem:[%s133 + $0x20] sm:$0xff] %v211
        %259 = vst [vmem:[%s133 + $0x28] sm:$0xff] %v240
        %260 = vst [vmem:[%s133 + $0x30] sm:$0xff] %v213
        %261 = vst [vmem:[%s133 + $0x38] sm:$0xff] %v242
        %262 = vst [vmem:[%s133 + $0x40] sm:$0xff] %v216
        %263 = vst [vmem:[%s133 + $0x48] sm:$0xff] %v245
        %264 = vst [vmem:[%s133 + $0x50] sm:$0xff] %v218
        %265 = vst [vmem:[%s133 + $0x58] sm:$0xff] %v247
        %266 = vst [vmem:[%s133 + $0x60] sm:$0xff] %v221
        %267 = vst [vmem:[%s133 + $0x68] sm:$0xff] %v250
        %268 = vst [vmem:[%s133 + $0x70] sm:$0xff] %v223
        %269 = vst [vmem:[%s133 + $0x78] sm:$0xff] %v252
        %s270 = sand.u32 %s68, 1
        %s271 = sand.u32 %s68, 1
        %s272 = smul.addr %s271, 128
        %s273 = scalar_lea.vmem [#allocation2], %s272
        // Predicated region
        $region29: #{complex_trans_conv.1} parent=27 // pred_check
          %p274 = pneg %p78
        $region30: #{complex_trans_conv.1} parent=27 // pred_check_branch
          %276 = sbr.rel (%p274) target = $region32
        $region31: #{complex_trans_conv.1} parent=27 // pred_region
          %s277 = smul.u32 2, %s13
          %s278 = smul.addr %s277, 8
          %s279 = scalar_lea.vmem %s2, %s278
          // Predicated region
          $region33: #{complex_trans_conv.1} parent=31 // pred_check
            _
          $region34: #{complex_trans_conv.1} parent=31 // pred_check_branch
            %281 = sbr.rel (0) target = $region36
          $region35: #{complex_trans_conv.1} parent=31 // pred_region
            // Predicated region
            $region37: #{complex_trans_conv.1} parent=35 // pred_check
              _
            $region38: #{complex_trans_conv.1} parent=35 // pred_check_branch
              %283 = sbr.rel (0) target = $region40
            $region39: #{complex_trans_conv.1} parent=35 // pred_region
              loop: start=0, step=1, limit=1
              $region41: #{complex_trans_conv.1} parent=39 // loop_pre_header
                _
              $region42: #{complex_trans_conv.1} parent=39 // loop_header
                %s285 = sphi 0, %s289
                %p286 = scmp.ge.s32.totalorder %s285, 1
                %s290 = sphi %s273, %s273
                %s291 = sphi %s279, %s279
              $region43: #{complex_trans_conv.1} parent=39 // loop_header_branch
                %288 = sbr.rel (%p286) target = $region47
              $region44: #{complex_trans_conv.1} parent=39 // loop_body
                %v292 = vld [vmem:[%s290] sm:$0xff]
                %293 = vst [vmem:[%s291] sm:$0xff] %v292
                %v294 = vld [vmem:[%s290 + $0x8] sm:$0xff]
                %295 = vst [vmem:[%s291 + $0x8] sm:$0xff] %v294
                %v296 = vld [vmem:[%s290 + $0x10] sm:$0xff]
                %297 = vst [vmem:[%s291 + $0x20] sm:$0xff] %v296
                %v298 = vld [vmem:[%s290 + $0x18] sm:$0xff]
                %299 = vst [vmem:[%s291 + $0x28] sm:$0xff] %v298
                %v300 = vld [vmem:[%s290 + $0x20] sm:$0xff]
                %301 = vst [vmem:[%s291 + $0x40] sm:$0xff] %v300
                %v302 = vld [vmem:[%s290 + $0x28] sm:$0xff]
                %303 = vst [vmem:[%s291 + $0x48] sm:$0xff] %v302
                %v304 = vld [vmem:[%s290 + $0x30] sm:$0xff]
                %305 = vst [vmem:[%s291 + $0x60] sm:$0xff] %v304
                %v306 = vld [vmem:[%s290 + $0x38] sm:$0xff]
                %307 = vst [vmem:[%s291 + $0x68] sm:$0xff] %v306
                %v308 = vld [vmem:[%s290 + $0x40] sm:$0xff]
                %309 = vst [vmem:[%s291 + $0x80] sm:$0xff] %v308
                %v310 = vld [vmem:[%s290 + $0x48] sm:$0xff]
                %311 = vst [vmem:[%s291 + $0x88] sm:$0xff] %v310
                %v312 = vld [vmem:[%s290 + $0x50] sm:$0xff]
                %313 = vst [vmem:[%s291 + $0xa0] sm:$0xff] %v312
                %v314 = vld [vmem:[%s290 + $0x58] sm:$0xff]
                %315 = vst [vmem:[%s291 + $0xa8] sm:$0xff] %v314
                %v316 = vld [vmem:[%s290 + $0x60] sm:$0xff]
                %317 = vst [vmem:[%s291 + $0xc0] sm:$0xff] %v316
                %v318 = vld [vmem:[%s290 + $0x68] sm:$0xff]
                %319 = vst [vmem:[%s291 + $0xc8] sm:$0xff] %v318
                %v320 = vld [vmem:[%s290 + $0x70] sm:$0xff]
                %321 = vst [vmem:[%s291 + $0xe0] sm:$0xff] %v320
                %v322 = vld [vmem:[%s290 + $0x78] sm:$0xff]
                %323 = vst [vmem:[%s291 + $0xe8] sm:$0xff] %v322
              $region45: #{complex_trans_conv.1} parent=39 // loop_footer
                %s289 = sadd.s32 1, %s285
              $region46: #{complex_trans_conv.1} parent=39 // loop_footer_branch
                %284 = sbr.rel target = $region42
              $region47: #{complex_trans_conv.1} parent=39 // loop_exit
                _
            $region40: #{complex_trans_conv.1} parent=35 // pred_fallthru
              _
            // Predicated region
            $region48: #{complex_trans_conv.1} parent=35 // pred_check
              _
            $region49: #{complex_trans_conv.1} parent=35 // pred_check_branch
              %325 = sbr.rel target = $region51
            $region50: #{complex_trans_conv.1} parent=35 // pred_region
              _
            $region51: #{complex_trans_conv.1} parent=35 // pred_fallthru
              _
          $region36: #{complex_trans_conv.1} parent=31 // pred_fallthru
            _
          %326 = vnop
        $region32: #{complex_trans_conv.1} parent=27 // pred_fallthru
          _
      $region28: #{complex_trans_conv.1} parent=5 // pred_fallthru
        _
      %p327 = scmp.le.s32.totalorder 2, %s8
      // Predicated region
      $region52: #{complex_trans_conv.1} parent=5 // pred_check
        %p328 = pneg %p327
      $region53: #{complex_trans_conv.1} parent=5 // pred_check_branch
        %330 = sbr.rel (%p328) target = $region55
      $region54: #{complex_trans_conv.1} parent=5 // pred_region
        %s331 = ssub.s32 %s8, 2
        // Predicated region
        $region56: #{complex_trans_conv.1} parent=54 // pred_check
          %p332 = pneg %p84
        $region57: #{complex_trans_conv.1} parent=54 // pred_check_branch
          %334 = sbr.rel (%p332) target = $region59
        $region58: #{complex_trans_conv.1} parent=54 // pred_region
          %s335 = sand.u32 %s69, 1
          %s336 = sand.u32 %s69, 1
          %s337 = smul.addr %s336, 128
          %s338 = scalar_lea.vmem [#allocation2], %s337
        $region59: #{complex_trans_conv.1} parent=54 // pred_fallthru
          _
      $region55: #{complex_trans_conv.1} parent=5 // pred_fallthru
        _
    $region6: #{complex_trans_conv.1} parent=1 // loop_footer
      %s12 = sadd.s32 1, %s8
    $region7: #{complex_trans_conv.1} parent=1 // loop_footer_branch
      %7 = sbr.rel target = $region3
    $region8: #{complex_trans_conv.1} parent=1 // loop_exit
      _

</llo_original>
